<compile_context>
chip_gen: v7x
topology: tpu7x:2x2x1
jax: 0.10.0
libtpu: 0.0.40
codegen_flags: <defaults>
</compile_context>

<pallas_src>
import functools

import jax
import jax.numpy as jnp
from jax.experimental import pallas as pl
from jax.experimental.pallas import tpu as pltpu

EPS = 1e-5


def _round_up(x, m):
    return ((x + m - 1) // m) * m


def _linear_bn_relu_dropout_kernel(seed_ref, x_ref, wt_ref, params_ref, o_ref, *,
                                   dropout_p, tile_f, f_out_pad):
    # Linear: (N, F_in_pad) @ (F_in_pad, tile_f)  (f32 accumulation on the MXU).
    y = jnp.dot(x_ref[...], wt_ref[...], preferred_element_type=jnp.float32)
    y = y + params_ref[0:1, :]                      # bias row

    # BatchNorm1d, training statistics over the batch axis (biased variance).
    mean = jnp.mean(y, axis=0, keepdims=True)
    centered = y - mean
    var = jnp.mean(centered * centered, axis=0, keepdims=True)
    z = centered * jax.lax.rsqrt(var + EPS)
    z = z * params_ref[1:2, :] + params_ref[2:3, :]  # gamma, beta rows

    # ReLU
    z = jnp.maximum(z, 0.0)

    # Dropout (training mode). Counter-based hash -> 23 uniform bits -> integer threshold.
    if dropout_p > 0.0:
        rows = jax.lax.broadcasted_iota(jnp.int32, z.shape, 0)
        cols = jax.lax.broadcasted_iota(jnp.int32, z.shape, 1) + pl.program_id(0) * tile_f
        lin = (rows * f_out_pad + cols).astype(jnp.uint32)   # unique id per output element
        h = lin + seed_ref[0].astype(jnp.uint32) * jnp.uint32(0x9E3779B9)
        # murmur3-style finalizer (integer VPU ops only)
        h = h ^ (h >> 16)
        h = h * jnp.uint32(0x85EBCA6B)
        h = h ^ (h >> 13)
        h = h * jnp.uint32(0xC2B2AE35)
        h = h ^ (h >> 16)
        r = (h >> 9).astype(jnp.int32)                        # uniform in [0, 2^23)
        thresh = jnp.int32(int(round(dropout_p * (1 << 23))))
        keep = r >= thresh                                    # P(keep) = 1 - p
        scale = jnp.float32(1.0 / (1.0 - dropout_p))
        z = jnp.where(keep, z, 0.0) * scale

    o_ref[...] = z.astype(o_ref.dtype)


def linear_batch_norm(x, w, b, gamma, beta, seed, *, dropout_p=0.5, matmul_dtype=None):
    """x: (N, F_in); w: (F_out, F_in); b/gamma/beta: (F_out,); seed: int.

    matmul_dtype: set to jnp.bfloat16 on v6e/v7x to feed the MXU bf16 (f32 accumulation
    is kept); default None keeps full-f32 matmul semantics.
    """
    assert 0.0 <= dropout_p < 1.0, "dropout_p must be in [0, 1)"
    n, f_in = x.shape
    f_out = w.shape[0]

    f_in_pad = _round_up(f_in, 128)
    f_out_pad = _round_up(f_out, 128)

    # Zero-pad the contraction dim (contributes 0) and the output-feature dim
    # (padded features normalize to 0 and never affect real features).
    x_p = jnp.zeros((n, f_in_pad), jnp.float32).at[:, :f_in].set(x.astype(jnp.float32))
    wt = jnp.zeros((f_in_pad, f_out_pad), jnp.float32)
    wt = wt.at[:f_in, :f_out].set(jnp.transpose(w).astype(jnp.float32))
    if matmul_dtype is not None:
        x_p = x_p.astype(matmul_dtype)
        wt = wt.astype(matmul_dtype)

    # Pack bias / gamma / beta into one (3, F_out_pad) slab -> single small DMA per tile.
    params = jnp.zeros((3, f_out_pad), jnp.float32)
    params = params.at[0, :f_out].set(b.astype(jnp.float32))
    params = params.at[1, :f_out].set(gamma.astype(jnp.float32))
    params = params.at[1, f_out:].set(1.0)
    params = params.at[2, :f_out].set(beta.astype(jnp.float32))

    # Lane-aligned output-feature tile: largest of 512/256/128 that divides F_out_pad.
    tile_f = next(t for t in (512, 256, 128) if f_out_pad % t == 0)
    grid = (f_out_pad // tile_f,)

    seed_arr = jnp.asarray([seed], dtype=jnp.int32)

    kernel = functools.partial(
        _linear_bn_relu_dropout_kernel,
        dropout_p=float(dropout_p), tile_f=tile_f, f_out_pad=f_out_pad)

    out_pad = pl.pallas_call(
        kernel,
        out_shape=jax.ShapeDtypeStruct((n, f_out_pad), jnp.float32),
        grid_spec=pltpu.PrefetchScalarGridSpec(
            num_scalar_prefetch=1,          # seed lives in SMEM, no per-step DMA
            grid=grid,
            in_specs=[
                pl.BlockSpec((n, f_in_pad), lambda j, seed: (0, 0)),        # x slab
                pl.BlockSpec((f_in_pad, tile_f), lambda j, seed: (0, j)),   # W^T tile
                pl.BlockSpec((3, tile_f), lambda j, seed: (0, j)),          # b/gamma/beta
            ],
            out_specs=pl.BlockSpec((n, tile_f), lambda j, seed: (0, j)),
        ),
        compiler_params=pltpu.CompilerParams(
            dimension_semantics=("parallel",),        # F_out tiles are independent
            vmem_limit_bytes=64 * 1024 * 1024,        # cap, not a reservation
        ),
    )(seed_arr, x_p, wt, params)

    # TODO(synk): for very large F_in, add a K grid axis ("arbitrary", last) with an f32
    # VMEM accumulator and do BN/ReLU/dropout in the K==last finalize branch.
    return out_pad[:, :f_out]


if __name__ == "__main__":
    N, F_IN, F_OUT = 8, 32, 16

    key = jax.random.PRNGKey(0)
    kx, kw, kb = jax.random.split(key, 3)

    # Deterministic parameter init (mimics nn.Linear's uniform(-1/sqrt(F_in), 1/sqrt(F_in))).
    bound = 1.0 / jnp.sqrt(jnp.float32(F_IN))
    w = jax.random.uniform(kw, (F_OUT, F_IN), jnp.float32, -bound, bound)
    b = jax.random.uniform(kb, (F_OUT,), jnp.float32, -bound, bound)
    gamma = jnp.ones((F_OUT,), jnp.float32)   # BatchNorm1d weight
    beta = jnp.zeros((F_OUT,), jnp.float32)   # BatchNorm1d bias

    x = jax.random.normal(kx, (N, F_IN), jnp.float32)

    out = linear_batch_norm(x, w, b, gamma, beta, seed=1234, dropout_p=0.5)
    jax.block_until_ready(out)

    assert out.shape == (N, F_OUT) and out.dtype == jnp.float32
    assert bool(jnp.all(jnp.isfinite(out)))
    print("KERNEL_OK")
</pallas_src>

<mosaic_0001>
module attributes {stable_mosaic.version = 11 : i64} {
  func.func @_linear_bn_relu_dropout_kernel(%arg0: i32, %arg1: memref<1xi32, #tpu.memory_space<smem>>, %arg2: memref<8x128xf32, #tpu.memory_space<vmem>>, %arg3: memref<128x128xf32, #tpu.memory_space<vmem>>, %arg4: memref<3x128xf32, #tpu.memory_space<vmem>>, %arg5: memref<8x128xf32, #tpu.memory_space<vmem>>) attributes {dimension_semantics = [#tpu.dimension_semantics<parallel>], iteration_bounds = array<i64: 1>, scalar_prefetch = 1 : i64, scratch_operands = 0 : i64, tpu.core_type = #tpu.core_type<tc>, window_params = [{pipeline_mode = #tpu.pipeline_mode<synchronous>, transform_indices = @transform_0, window_bounds = array<i64: 8, 128>}, {transform_indices = @transform_1, window_bounds = array<i64: 128, 128>}, {transform_indices = @transform_2, window_bounds = array<i64: 3, 128>}, {transform_indices = @transform_3, window_bounds = array<i64: 8, 128>}]} {
    %c0 = arith.constant 0 : index
    %c0_0 = arith.constant 0 : index
    %0 = vector.load %arg2[%c0, %c0_0] : memref<8x128xf32, #tpu.memory_space<vmem>>, vector<8x128xf32>
    %c0_1 = arith.constant 0 : index
    %c0_2 = arith.constant 0 : index
    %1 = vector.load %arg3[%c0_1, %c0_2] : memref<128x128xf32, #tpu.memory_space<vmem>>, vector<128x128xf32>
    %cst = arith.constant dense<0.000000e+00> : vector<8x128xf32>
    %2 = tpu.matmul %0, %1, %cst {dimension_numbers = #tpu.dot_dimension_numbers<[1], [0], [0], [1], [0, 0, 1, 1], [], []>} : vector<8x128xf32>, vector<128x128xf32>, vector<8x128xf32> -> vector<8x128xf32>
    %c0_3 = arith.constant 0 : index
    %c0_4 = arith.constant 0 : index
    %3 = vector.load %arg4[%c0_3, %c0_4] : memref<3x128xf32, #tpu.memory_space<vmem>>, vector<1x128xf32>
    %4 = vector.broadcast %3 : vector<1x128xf32> to vector<8x128xf32>
    %5 = arith.addf %2, %4 : vector<8x128xf32>
    %cst_5 = arith.constant dense<0.000000e+00> : vector<128xf32>
    %6 = vector.multi_reduction <add>, %5, %cst_5 [0] : vector<8x128xf32> to vector<128xf32>
    %7 = vector.shape_cast %6 : vector<128xf32> to vector<1x128xf32>
    %cst_6 = arith.constant 8.000000e+00 : f32
    %8 = vector.broadcast %cst_6 : f32 to vector<1x128xf32>
    %9 = arith.divf %7, %8 : vector<1x128xf32>
    %10 = vector.broadcast %9 : vector<1x128xf32> to vector<8x128xf32>
    %11 = arith.subf %5, %10 : vector<8x128xf32>
    %12 = arith.mulf %11, %11 : vector<8x128xf32>
    %cst_7 = arith.constant dense<0.000000e+00> : vector<128xf32>
    %13 = vector.multi_reduction <add>, %12, %cst_7 [0] : vector<8x128xf32> to vector<128xf32>
    %14 = vector.shape_cast %13 : vector<128xf32> to vector<1x128xf32>
    %cst_8 = arith.constant 8.000000e+00 : f32
    %15 = vector.broadcast %cst_8 : f32 to vector<1x128xf32>
    %16 = arith.divf %14, %15 : vector<1x128xf32>
    %cst_9 = arith.constant 9.99999974E-6 : f32
    %17 = vector.broadcast %cst_9 : f32 to vector<1x128xf32>
    %18 = arith.addf %16, %17 : vector<1x128xf32>
    %19 = math.rsqrt %18 : vector<1x128xf32>
    %20 = vector.broadcast %19 : vector<1x128xf32> to vector<8x128xf32>
    %21 = arith.mulf %11, %20 : vector<8x128xf32>
    %c1 = arith.constant 1 : index
    %c0_10 = arith.constant 0 : index
    %22 = vector.load %arg4[%c1, %c0_10] : memref<3x128xf32, #tpu.memory_space<vmem>>, vector<1x128xf32>
    %23 = vector.broadcast %22 : vector<1x128xf32> to vector<8x128xf32>
    %24 = arith.mulf %21, %23 : vector<8x128xf32>
    %c2 = arith.constant 2 : index
    %c0_11 = arith.constant 0 : index
    %25 = vector.load %arg4[%c2, %c0_11] : memref<3x128xf32, #tpu.memory_space<vmem>>, vector<1x128xf32>
    %26 = vector.broadcast %25 : vector<1x128xf32> to vector<8x128xf32>
    %27 = arith.addf %24, %26 : vector<8x128xf32>
    %cst_12 = arith.constant 0.000000e+00 : f32
    %28 = vector.broadcast %cst_12 : f32 to vector<8x128xf32>
    %29 = arith.maximumf %27, %28 : vector<8x128xf32>
    %30 = tpu.iota {dimensions = array<i32: 0>} : vector<8x128xi32>
    %31 = tpu.iota {dimensions = array<i32: 1>} : vector<8x128xi32>
    %c128_i32 = arith.constant 128 : i32
    %32 = arith.muli %arg0, %c128_i32 : i32
    %33 = vector.broadcast %32 : i32 to vector<8x128xi32>
    %34 = arith.addi %31, %33 : vector<8x128xi32>
    %c128_i32_13 = arith.constant 128 : i32
    %35 = vector.broadcast %c128_i32_13 : i32 to vector<8x128xi32>
    %36 = arith.muli %30, %35 : vector<8x128xi32>
    %37 = arith.addi %36, %34 : vector<8x128xi32>
    %c0_14 = arith.constant 0 : index
    %38 = memref.load %arg1[%c0_14] : memref<1xi32, #tpu.memory_space<smem>>
    %c-1640531527_i32 = arith.constant -1640531527 : i32
    %39 = arith.muli %38, %c-1640531527_i32 : i32
    %40 = vector.broadcast %39 : i32 to vector<8x128xi32>
    %41 = arith.addi %37, %40 : vector<8x128xi32>
    %c16_i32 = arith.constant 16 : i32
    %42 = vector.broadcast %c16_i32 : i32 to vector<8x128xi32>
    %43 = arith.shrui %41, %42 : vector<8x128xi32>
    %44 = arith.xori %41, %43 : vector<8x128xi32>
    %c-2048144789_i32 = arith.constant -2048144789 : i32
    %45 = vector.broadcast %c-2048144789_i32 : i32 to vector<8x128xi32>
    %46 = arith.muli %44, %45 : vector<8x128xi32>
    %c13_i32 = arith.constant 13 : i32
    %47 = vector.broadcast %c13_i32 : i32 to vector<8x128xi32>
    %48 = arith.shrui %46, %47 : vector<8x128xi32>
    %49 = arith.xori %46, %48 : vector<8x128xi32>
    %c-1028477387_i32 = arith.constant -1028477387 : i32
    %50 = vector.broadcast %c-1028477387_i32 : i32 to vector<8x128xi32>
    %51 = arith.muli %49, %50 : vector<8x128xi32>
    %c16_i32_15 = arith.constant 16 : i32
    %52 = vector.broadcast %c16_i32_15 : i32 to vector<8x128xi32>
    %53 = arith.shrui %51, %52 : vector<8x128xi32>
    %54 = arith.xori %51, %53 : vector<8x128xi32>
    %c9_i32 = arith.constant 9 : i32
    %55 = vector.broadcast %c9_i32 : i32 to vector<8x128xi32>
    %56 = arith.shrui %54, %55 : vector<8x128xi32>
    %c4194304_i32 = arith.constant 4194304 : i32
    %57 = vector.broadcast %c4194304_i32 : i32 to vector<8x128xi32>
    %58 = arith.cmpi sge, %56, %57 : vector<8x128xi32>
    %cst_16 = arith.constant 0.000000e+00 : f32
    %59 = vector.broadcast %cst_16 : f32 to vector<8x128xf32>
    %60 = arith.select %58, %29, %59 : vector<8x128xi1>, vector<8x128xf32>
    %cst_17 = arith.constant 2.000000e+00 : f32
    %61 = vector.broadcast %cst_17 : f32 to vector<8x128xf32>
    %62 = arith.mulf %60, %61 : vector<8x128xf32>
    %c0_18 = arith.constant 0 : index
    %c0_19 = arith.constant 0 : index
    %63 = vector.load %arg5[%c0_18, %c0_19] : memref<8x128xf32, #tpu.memory_space<vmem>>, vector<8x128xf32>
    tpu.vector_store %arg5[%c0_18, %c0_19], %62 {strides = array<i32>} : memref<8x128xf32, #tpu.memory_space<vmem>>, vector<8x128xf32>,
    return
  }
  func.func @transform_0(%arg0: i32, %arg1: memref<1xi32, #tpu.memory_space<smem>>) -> (i32, i32) {
    %c0_i32 = arith.constant 0 : i32
    %c0_i32_0 = arith.constant 0 : i32
    %c0_i32_1 = arith.constant 0 : i32
    return %c0_i32, %c0_i32_0 : i32, i32
  }
  func.func @transform_1(%arg0: i32, %arg1: memref<1xi32, #tpu.memory_space<smem>>) -> (i32, i32) {
    %c0_i32 = arith.constant 0 : i32
    %c0_i32_0 = arith.constant 0 : i32
    return %c0_i32, %arg0 : i32, i32
  }
  func.func @transform_2(%arg0: i32, %arg1: memref<1xi32, #tpu.memory_space<smem>>) -> (i32, i32) {
    %c0_i32 = arith.constant 0 : i32
    %c0_i32_0 = arith.constant 0 : i32
    return %c0_i32, %arg0 : i32, i32
  }
  func.func @transform_3(%arg0: i32, %arg1: memref<1xi32, #tpu.memory_space<smem>>) -> (i32, i32) {
    %c0_i32 = arith.constant 0 : i32
    %c0_i32_0 = arith.constant 0 : i32
    return %c0_i32, %arg0 : i32, i32
  }
}

</mosaic_0001>

<llo_original>
// kernel: tpu_custom_call.1
$region0: #{tpu_custom_call.1}
  #allocation0 [shape = 'u32[]', space=smem, size = 0x4, offset = 0x4, fixed_abs, tag = 'smem constant byte address 0x4 - core index']
  #allocation1 [shape = 'u32[144,128]{1,0:T(1,128)}', space=vmem, size = 0x12000, scoped, tag = 'internal scratch']
  #allocation2 [shape = 's32[1]{0}', space=sflag, size = 0x4, scoped, tag = 'scoped memory for tpu_custom_call.1']
  #allocation3 [shape = 's32[1]{0:T(128)S(6)}', space=smem, size = 0x200, scoped, tag = 'prefetched SMEM operand 0']
  %s0 = inlined_call_operand.<no memory space> [shape: s32[1], index: 0, kind: input, shape index: {}]
  %s1 = inlined_call_operand.hbm [shape: f32[8,128], index: 1, kind: input, shape index: {}]
  %s2 = inlined_call_operand.hbm [shape: f32[128,128], index: 2, kind: input, shape index: {}]
  %s3 = inlined_call_operand.hbm [shape: f32[3,128], index: 3, kind: input, shape index: {}]
  %s4 = inlined_call_operand.hbm [shape: f32[8,128], index: 4, kind: output, shape index: {}]
  %s5 = sld [smem:[#allocation0]]
  $region34: #{tpu_custom_call.1} parent=0
    _
  %s7 = ssub.s32 1, %s5
  %s8 = scalar_select 0, %s7, %s5
  %9 = sst [smem:[#allocation3]] %s0
  $region1: #{tpu_custom_call.1} parent=0
    #allocation4 [shape = 'u8[4096]{0}', space=vmem, size = 0x1000, scoped, tag = 'input window, operand 1, single buffered']
    #allocation5 [shape = 's32[1]{0}', space=sflag, size = 0x4, scoped, tag = 'scoped memory for tpu_custom_call.1']
    #allocation6 [shape = 's32[1]{0}', space=sflag, size = 0x4, scoped, tag = 'scoped memory for tpu_custom_call.1']
    #allocation7 [shape = 'u8[65536]{0}', space=vmem, size = 0x10000, scoped, tag = 'input window, operand 2, single buffered']
    #allocation8 [shape = 's32[1]{0}', space=sflag, size = 0x4, scoped, tag = 'scoped memory for tpu_custom_call.1']
    #allocation9 [shape = 'u8[2048]{0}', space=vmem, size = 0x800, scoped, tag = 'input window, operand 3, single buffered']
    #allocation10 [shape = 'u8[4096]{0}', space=vmem, size = 0x1000, scoped, tag = 'output window, operand 0, single buffered']
    %10 = vsyncpa [#allocation5], 0
    %11 = vsyncpa [#allocation8], 0
    %12 = vsyncpa [#allocation6], 0
    // Predicated region
    $region2: #{tpu_custom_call.1} parent=1 // pred_check
      _
    $region3: #{tpu_custom_call.1} parent=1 // pred_check_branch
      %14 = sbr.rel (0) target = $region5
    $region4: #{tpu_custom_call.1} parent=1 // pred_region
      %s16 = ssub.s32 128, 128
      %17 = vsyncadd [#allocation5], %s16
      %s19 = sshll.u32 [#allocation4], 4
      %s20 = int_to_ptr.vmem [resolvable:$true] %s19
      %22 = dma.hbm_to_vmem [thread:$0]  %s1, 128, %s20, [#allocation5]
    $region5: #{tpu_custom_call.1} parent=1 // pred_fallthru
      _
    // Predicated region
    $region6: #{tpu_custom_call.1} parent=1 // pred_check
      _
    $region7: #{tpu_custom_call.1} parent=1 // pred_check_branch
      %24 = sbr.rel (0) target = $region9
    $region8: #{tpu_custom_call.1} parent=1 // pred_region
      %s26 = ssub.s32 2048, 2048
      %27 = vsyncadd [#allocation8], %s26
      %s28 = sshll.u32 [#allocation7], 4
      %s29 = int_to_ptr.vmem [resolvable:$true] %s28
      %34 = dma.hbm_to_vmem [thread:$0]  %s2, 2048, %s29, [#allocation8], 128, 128, 8
    $region9: #{tpu_custom_call.1} parent=1 // pred_fallthru
      _
    // Predicated region
    $region10: #{tpu_custom_call.1} parent=1 // pred_check
      _
    $region11: #{tpu_custom_call.1} parent=1 // pred_check_branch
      %36 = sbr.rel (0) target = $region13
    $region12: #{tpu_custom_call.1} parent=1 // pred_region
      %s38 = ssub.s32 64, 64
      %39 = vsyncadd [#allocation8], %s38
      %s41 = sshll.u32 [#allocation9], 4
      %s42 = int_to_ptr.vmem [resolvable:$true] %s41
      %44 = dma.hbm_to_vmem [thread:$0]  %s3, 64, %s42, [#allocation8]
    $region13: #{tpu_custom_call.1} parent=1 // pred_fallthru
      _
    // Predicated region
    $region14: #{tpu_custom_call.1} parent=1 // pred_check
      _
    $region15: #{tpu_custom_call.1} parent=1 // pred_check_branch
      %46 = sbr.rel (0) target = $region17
    $region16: #{tpu_custom_call.1} parent=1 // pred_region
      %47 = dma.done [#allocation5], 128
    $region17: #{tpu_custom_call.1} parent=1 // pred_fallthru
      _
    // Predicated region
    $region18: #{tpu_custom_call.1} parent=1 // pred_check
      _
    $region19: #{tpu_custom_call.1} parent=1 // pred_check_branch
      %49 = sbr.rel (0) target = $region21
    $region20: #{tpu_custom_call.1} parent=1 // pred_region
      %50 = dma.done [#allocation8], 2048
    $region21: #{tpu_custom_call.1} parent=1 // pred_fallthru
      _
    // Predicated region
    $region22: #{tpu_custom_call.1} parent=1 // pred_check
      _
    $region23: #{tpu_custom_call.1} parent=1 // pred_check_branch
      %52 = sbr.rel (0) target = $region25
    $region24: #{tpu_custom_call.1} parent=1 // pred_region
      %53 = dma.done [#allocation8], 64
    $region25: #{tpu_custom_call.1} parent=1 // pred_fallthru
      _
    %v54 = vld [vmem:[#allocation4] sm:$0xff]
    %v55 = vld [vmem:[#allocation7] sm:$0xff]
    %v56 = vld [vmem:[#allocation7 + $0x8] sm:$0xff]
    %v57 = vld [vmem:[#allocation7 + $0x10] sm:$0xff]
    %v58 = vld [vmem:[#allocation7 + $0x18] sm:$0xff]
    %v59 = vld [vmem:[#allocation7 + $0x20] sm:$0xff]
    %v60 = vld [vmem:[#allocation7 + $0x28] sm:$0xff]
    %v61 = vld [vmem:[#allocation7 + $0x30] sm:$0xff]
    %v62 = vld [vmem:[#allocation7 + $0x38] sm:$0xff]
    %v63 = vld [vmem:[#allocation7 + $0x40] sm:$0xff]
    %v64 = vld [vmem:[#allocation7 + $0x48] sm:$0xff]
    %v65 = vld [vmem:[#allocation7 + $0x50] sm:$0xff]
    %v66 = vld [vmem:[#allocation7 + $0x58] sm:$0xff]
    %v67 = vld [vmem:[#allocation7 + $0x60] sm:$0xff]
    %v68 = vld [vmem:[#allocation7 + $0x68] sm:$0xff]
    %v69 = vld [vmem:[#allocation7 + $0x70] sm:$0xff]
    %v70 = vld [vmem:[#allocation7 + $0x78] sm:$0xff]
    %v71 = vld [vmem:[#allocation9] sm:$0x1]
    %v72 = vlaneseq
    %v73 = vshrl.u32 %v72, 7
    %v74 = vsub.s32 0, %v73
    %v75 = vrot.slane %v71, %v74
    %76 = vmatprep.subr.mxu0 0.0
    %77 = vmatpush1.msra.mxu0 %v55
    %78 = vmatprep.subr.mxu0 0.0
    %79 = vmatpush1.msra.mxu0 %v56
    %80 = vmatprep.subr.mxu0 0.0
    %81 = vmatpush1.msra.mxu0 %v57
    %82 = vmatprep.subr.mxu0 0.0
    %83 = vmatpush1.msra.mxu0 %v58
    %84 = vmatprep.subr.mxu0 0.0
    %85 = vmatpush1.msra.mxu0 %v59
    %86 = vmatprep.subr.mxu0 0.0
    %87 = vmatpush1.msra.mxu0 %v60
    %88 = vmatprep.subr.mxu0 0.0
    %89 = vmatpush1.msra.mxu0 %v61
    %90 = vmatprep.subr.mxu0 0.0
    %91 = vmatpush1.msra.mxu0 %v62
    %92 = vmatprep.subr.mxu0 0.0
    %93 = vmatpush1.msra.mxu0 %v63
    %94 = vmatprep.subr.mxu0 0.0
    %95 = vmatpush1.msra.mxu0 %v64
    %96 = vmatprep.subr.mxu0 0.0
    %97 = vmatpush1.msra.mxu0 %v65
    %98 = vmatprep.subr.mxu0 0.0
    %99 = vmatpush1.msra.mxu0 %v66
    %100 = vmatprep.subr.mxu0 0.0
    %101 = vmatpush1.msra.mxu0 %v67
    %102 = vmatprep.subr.mxu0 0.0
    %103 = vmatpush1.msra.mxu0 %v68
    %104 = vmatprep.subr.mxu0 0.0
    %105 = vmatpush1.msra.mxu0 %v69
    %106 = vmatprep.subr.mxu0 0.0
    %107 = vmatpush1.msra.mxu0 %v70
    %108 = vmatprep.subr.mxu0 0.0
    %109 = vmatpush1.msra.mxu0 0.0
    %110 = vmatprep.subr.mxu0 0.0
    %111 = vmatpush1.msra.mxu0 0.0
    %112 = vmatprep.subr.mxu0 0.0
    %113 = vmatpush1.msra.mxu0 0.0
    %114 = vmatprep.subr.mxu0 0.0
    %115 = vmatpush1.msra.mxu0 0.0
    %116 = vmatprep.subr.mxu0 0.0
    %117 = vmatpush1.msra.mxu0 0.0
    %118 = vmatprep.subr.mxu0 0.0
    %119 = vmatpush1.msra.mxu0 0.0
    %120 = vmatprep.subr.mxu0 0.0
    %121 = vmatpush1.msra.mxu0 0.0
    %122 = vmatprep.subr.mxu0 0.0
    %123 = vmatpush1.msra.mxu0 0.0
    %124 = vmatprep.subr.mxu0 0.0
    %125 = vmatpush1.msra.mxu0 0.0
    %126 = vmatprep.subr.mxu0 0.0
    %127 = vmatpush1.msra.mxu0 0.0
    %128 = vmatprep.subr.mxu0 0.0
    %129 = vmatpush1.msra.mxu0 0.0
    %130 = vmatprep.subr.mxu0 0.0
    %131 = vmatpush1.msra.mxu0 0.0
    %132 = vmatprep.subr.mxu0 0.0
    %133 = vmatpush1.msra.mxu0 0.0
    %134 = vmatprep.subr.mxu0 0.0
    %135 = vmatpush1.msra.mxu0 0.0
    %136 = vmatprep.subr.mxu0 0.0
    %137 = vmatpush1.msra.mxu0 0.0
    %138 = vmatprep.subr.mxu0 0.0
    %139 = vmatpush1.msra.mxu0 0.0
    %140 = vmatprep.mubr.f32.mxu0 0.0
    %141 = vmatmul.mubr.f32.gmra.mrb[0].mxu0 %v54
    %v142 = vpop.f32.mrb[0].mxu0
    %v143 = vadd.f32 %v75, %v142
    %v144 = vpop.f32.mrb[0].mxu0
    %145 = vdwg.mxu0
    %v146 = vrot.slane %v143, 4
    %v147 = vadd.f32 %v143, %v146
    %v148 = vrot.slane %v147, 2
    %v149 = vadd.f32 %v147, %v148
    %v150 = vrot.slane %v149, 1
    %v151 = vadd.f32 %v149, %v150
    %v152 = vrcp.pop 8.0
    %v153 = vmul.f32 %v151, %v152
    %v154 = vsub.f32 %v143, %v153
    %v155 = vmul.f32 %v154, %v154
    %v156 = vrot.slane %v155, 4
    %v157 = vadd.f32 %v155, %v156
    %v158 = vrot.slane %v157, 2
    %v159 = vadd.f32 %v157, %v158
    %v160 = vrot.slane %v159, 1
    %v161 = vadd.f32 %v159, %v160
    %v162 = vmul.f32 %v161, %v152
    %v163 = vadd.f32 %v162, 1e-05
    %v164 = vrsqrt.pop %v163
    %v165 = vmul.f32 %v154, %v164
    %v166 = vld [vmem:[#allocation9 + $0x1] sm:$0x1]
    %v167 = vlaneseq
    %v168 = vshrl.u32 %v167, 7
    %v169 = vsub.s32 0, %v168
    %v170 = vrot.slane %v166, %v169
    %v171 = vmul.f32 %v165, %v170
    %v172 = vld [vmem:[#allocation9 + $0x2] sm:$0x1]
    %v173 = vlaneseq
    %v174 = vshrl.u32 %v173, 7
    %v175 = vsub.s32 0, %v174
    %v176 = vrot.slane %v172, %v175
    %v177 = vadd.f32 %v171, %v176
    %v178 = vmax.f32 %v177, 0.0
    %v179 = vlaneseq
    %v180 = vshrl.u32 %v179, 7
    %v181 = vlaneseq
    %v182 = vand.u32 %v181, 127
    %s183 = smul.u32 0, 128
    %v184 = vstv %s183
    %v185 = vadd.s32 %v182, %v184
    %v186 = vmul.u32 %v180, 128
    %v187 = vadd.s32 %v186, %v185
    %s188 = sld [smem:[#allocation3]]
    %s189 = smul.u32 %s188, 2654435769
    %v190 = vstv %s189
    %v191 = vadd.s32 %v187, %v190
    %v192 = vshrl.u32 %v191, 16
    %v193 = vxor.u32 %v191, %v192
    %v194 = vmul.u32 %v193, 2246822507
    %v195 = vshrl.u32 %v194, 13
    %v196 = vxor.u32 %v194, %v195
    %v197 = vmul.u32 %v196, 3266489909
    %v198 = vshrl.u32 %v197, 16
    %v199 = vxor.u32 %v197, %v198
    %v200 = vshrl.u32 %v199, 9
    %vm201 = vcmp.ge.s32.totalorder %v200, 4194304
    %v202 = vsel %vm201, %v178, 0.0
    %v203 = vmul.f32 %v202, 2.0
    %204 = vst [vmem:[#allocation10] sm:$0xff] %v203
    // Predicated region
    $region26: #{tpu_custom_call.1} parent=1 // pred_check
      _
    $region27: #{tpu_custom_call.1} parent=1 // pred_check_branch
      %206 = sbr.rel (0) target = $region29
    $region28: #{tpu_custom_call.1} parent=1 // pred_region
      %s208 = ssub.s32 128, 128
      %209 = vsyncadd [#allocation6], %s208
      %s211 = sshll.u32 [#allocation10], 4
      %s212 = int_to_ptr.vmem [resolvable:$true] %s211
      %214 = dma.vmem_to_hbm [thread:$0]  %s212, 128, %s4, [#allocation6]
    $region29: #{tpu_custom_call.1} parent=1 // pred_fallthru
      _
    // Predicated region
    $region30: #{tpu_custom_call.1} parent=1 // pred_check
      _
    $region31: #{tpu_custom_call.1} parent=1 // pred_check_branch
      %216 = sbr.rel (0) target = $region33
    $region32: #{tpu_custom_call.1} parent=1 // pred_region
      %217 = dma.done [#allocation6], 128
    $region33: #{tpu_custom_call.1} parent=1 // pred_fallthru
      _
    %218 = vsyncpa [#allocation5], 1
    %219 = vsyncpa [#allocation8], 1
    %220 = vsyncpa [#allocation6], 1

</llo_original>
